<compile_context>
chip_gen: v5e
topology: v5e:2x2
jax: 0.10.0
libtpu: 0.0.40
codegen_flags: <defaults>
</compile_context>

<pallas_src>
import functools

import jax
import jax.numpy as jnp
from jax.experimental import pallas as pl
from jax.experimental.pallas import tpu as pltpu

LANES = 128


def _project3d_kernel(p_ref, px_ref, py_ref, pts_ref, out_ref, *, eps):
    # p_ref   : (B*12,)    f32 SMEM -- rows of (K@T)[:3,:], scales & -1 pre-folded
    # px_ref  : (128, 256) f32 VMEM -- constant even-lane selector (resident)
    # py_ref  : (128, 256) f32 VMEM -- constant odd-lane selector (resident)
    # pts_ref : (1, 4, TR, 128) f32 -- homogeneous points, lane-dense
    # out_ref : (1, TR, 256) f32    -- interleaved (x, y) pairs
    b = pl.program_id(0)
    base = b * 12

    x0 = pts_ref[0, 0]          # (TR, 128)
    x1 = pts_ref[0, 1]
    x2 = pts_ref[0, 2]
    x3 = pts_ref[0, 3]

    # cam rows as scalar-broadcast FMAs (VPU); scales & -1 folded into rows 0/1.
    num_x = (p_ref[base + 0] * x0 + p_ref[base + 1] * x1
             + p_ref[base + 2] * x2 + p_ref[base + 3] * x3)
    num_y = (p_ref[base + 4] * x0 + p_ref[base + 5] * x1
             + p_ref[base + 6] * x2 + p_ref[base + 7] * x3)
    z = (p_ref[base + 8] * x0 + p_ref[base + 9] * x1
         + p_ref[base + 10] * x2 + p_ref[base + 11] * x3)

    # Perspective divide on the EUP: approx reciprocal + one Newton step
    # (relative error ~1e-7, well inside f32 / test tolerance).
    d = z + eps
    inv = pl.reciprocal(d, approx=True)
    inv = inv * (2.0 - d * inv)

    xn = num_x * inv            # already includes the "-1" (folded into rows)
    yn = num_y * inv

    # Lane-interleave (x0,y0,x1,y1,...) so HBM output is already (B,H,W,2)
    # memory order.  Two (TR,128)@(128,256) 0/1-selector matmuls on the idle
    # MXU -- no concat temp, no lane-shuffle reshapes.
    out_ref[0] = (jnp.dot(xn, px_ref[...], preferred_element_type=jnp.float32)
                  + jnp.dot(yn, py_ref[...], preferred_element_type=jnp.float32))


def _choose_tile_rows(rows, max_tile_rows):
    """Row-tile of 128-pixel rows: whole array if small, else a multiple-of-8
    tile bounded by max_tile_rows (VMEM budget); never degrades to tiny tiles."""
    if rows <= max_tile_rows:
        return rows                         # block dim == full dim -> always legal
    return max(8, (max_tile_rows // 8) * 8)


def project3d(points, K, T, *, batch_size, height, width, eps=1e-7,
              max_tile_rows=1024):
    """Pallas implementation of Project3D.forward.

    points: (B, 4, H*W) float32;  K, T: (B, 4, 4) float32
    returns (B, H, W, 2) float32
    """
    B = batch_size
    N = height * width
    assert points.shape == (B, 4, N)

    rows = pl.cdiv(N, LANES)
    tr = _choose_tile_rows(rows, max_tile_rows)
    n_tiles = pl.cdiv(rows, tr)
    rows_padded = n_tiles * tr
    n_padded = rows_padded * LANES

    # Glue: tiny 4x4 matmuls; fold normalization scales AND the trailing -1
    # (row' = s*row - row_z) into the x/y rows of the projection matrix.
    P = jnp.matmul(K.astype(jnp.float32), T.astype(jnp.float32))[:, :3, :]
    sx = jnp.float32(2.0 / (width - 1))
    sy = jnp.float32(2.0 / (height - 1))
    row_x = sx * P[:, 0] - P[:, 2]
    row_y = sy * P[:, 1] - P[:, 2]
    row_z = P[:, 2]
    p_flat = jnp.stack([row_x, row_y, row_z], axis=1).reshape(B * 12)

    # Constant 0/1 lane-interleave selectors: out[:, 2i] = xn[:, i],
    # out[:, 2i+1] = yn[:, i].
    lane = jnp.arange(LANES)
    col = jnp.arange(2 * LANES)
    perm_x = (col[None, :] == 2 * lane[:, None]).astype(jnp.float32)
    perm_y = (col[None, :] == 2 * lane[:, None] + 1).astype(jnp.float32)

    pts = points.astype(jnp.float32)
    if n_padded != N:
        # Zero-pad the pixel axis (x=y=z=w=0 -> finite output, sliced off below).
        pts = jnp.pad(pts, ((0, 0), (0, 0), (0, n_padded - N)))
    pts = pts.reshape(B, 4, rows_padded, LANES)

    kernel = functools.partial(_project3d_kernel, eps=float(eps))

    out = pl.pallas_call(
        kernel,
        out_shape=jax.ShapeDtypeStruct((B, rows_padded, 2 * LANES), jnp.float32),
        grid_spec=pltpu.PrefetchScalarGridSpec(
            num_scalar_prefetch=0,
            grid=(B, n_tiles),
            in_specs=[
                pl.BlockSpec(memory_space=pltpu.MemorySpace.SMEM),            # p_flat
                pl.BlockSpec((LANES, 2 * LANES), lambda b, n: (0, 0)),        # perm_x
                pl.BlockSpec((LANES, 2 * LANES), lambda b, n: (0, 0)),        # perm_y
                pl.BlockSpec((1, 4, tr, LANES), lambda b, n: (b, 0, n, 0)),   # pts
            ],
            out_specs=pl.BlockSpec((1, tr, 2 * LANES), lambda b, n: (b, n, 0)),
        ),
        compiler_params=pltpu.CompilerParams(
            dimension_semantics=("parallel", "parallel"),
            vmem_limit_bytes=40 * 1024 * 1024),
    )(p_flat, perm_x, perm_y, pts)

    # (B, rows_padded, 256) already has interleaved (x,y) memory order.
    out = out.reshape(B, rows_padded * LANES, 2)
    if n_padded != N:
        out = out[:, :N, :]
    return out.reshape(B, height, width, 2)


def project3d_ref(points, K, T, *, batch_size, height, width, eps=1e-7):
    """Pure-JAX reference mirroring the PyTorch forward exactly."""
    P = jnp.matmul(K, T)[:, :3, :]
    cam = jnp.matmul(P, points)                                   # (B, 3, N)
    pix = cam[:, :2, :] / (cam[:, 2, :][:, None, :] + eps)
    pix = pix.reshape(batch_size, 2, height, width)
    pix = jnp.transpose(pix, (0, 2, 3, 1))
    pix = pix.at[..., 0].divide(width - 1)
    pix = pix.at[..., 1].divide(height - 1)
    return (pix - 0.5) * 2


if __name__ == "__main__":
    B, H, W = 2, 16, 16
    N = H * W

    key = jax.random.PRNGKey(0)
    k_xy, k_d, k_K, k_T = jax.random.split(key, 4)

    # Well-conditioned homogeneous points (positive depth, w = 1).
    xy = 0.5 * jax.random.normal(k_xy, (B, 2, N), dtype=jnp.float32)
    depth = 1.0 + jax.random.uniform(k_d, (B, 1, N), dtype=jnp.float32)
    points = jnp.concatenate(
        [xy, depth, jnp.ones((B, 1, N), jnp.float32)], axis=1)

    # Deterministic synthetic camera matrices (near-identity, well-conditioned).
    K = jnp.eye(4, dtype=jnp.float32)[None] \
        + 0.05 * jax.random.normal(k_K, (B, 4, 4), dtype=jnp.float32)
    T = jnp.eye(4, dtype=jnp.float32)[None] \
        + 0.05 * jax.random.normal(k_T, (B, 4, 4), dtype=jnp.float32)

    out = project3d(points, K, T, batch_size=B, height=H, width=W)
    out = jax.block_until_ready(out)

    ref = project3d_ref(points, K, T, batch_size=B, height=H, width=W)
    assert out.shape == (B, H, W, 2)
    assert jnp.allclose(out, ref, atol=1e-4, rtol=1e-4), \
        f"max err {jnp.max(jnp.abs(out - ref))}"

    print("KERNEL_OK")
</pallas_src>

<mosaic_0001>
module attributes {stable_mosaic.version = 11 : i64} {
  func.func @_project3d_kernel(%arg0: i32, %arg1: i32, %arg2: memref<24xf32, #tpu.memory_space<smem>>, %arg3: memref<128x256xf32, #tpu.memory_space<vmem>>, %arg4: memref<128x256xf32, #tpu.memory_space<vmem>>, %arg5: memref<1x4x2x128xf32, #tpu.memory_space<vmem>>, %arg6: memref<1x2x256xf32, #tpu.memory_space<vmem>>) attributes {dimension_semantics = [#tpu.dimension_semantics<parallel>, #tpu.dimension_semantics<parallel>], iteration_bounds = array<i64: 2, 1>, scalar_prefetch = 0 : i64, scratch_operands = 0 : i64, tpu.core_type = #tpu.core_type<tc>, window_params = [{transform_indices = @transform_0, window_bounds = array<i64: 24>}, {pipeline_mode = #tpu.pipeline_mode<synchronous>, transform_indices = @transform_1, window_bounds = array<i64: 128, 256>}, {pipeline_mode = #tpu.pipeline_mode<synchronous>, transform_indices = @transform_2, window_bounds = array<i64: 128, 256>}, {transform_indices = @transform_3, window_bounds = array<i64: 1, 4, 2, 128>}, {transform_indices = @transform_4, window_bounds = array<i64: 1, 2, 256>}]} {
    %c12_i32 = arith.constant 12 : i32
    %0 = arith.muli %arg0, %c12_i32 : i32
    %c0 = arith.constant 0 : index
    %c0_0 = arith.constant 0 : index
    %c0_1 = arith.constant 0 : index
    %c0_2 = arith.constant 0 : index
    %1 = vector.load %arg5[%c0, %c0_0, %c0_1, %c0_2] : memref<1x4x2x128xf32, #tpu.memory_space<vmem>>, vector<1x1x2x128xf32>
    %2 = vector.shape_cast %1 : vector<1x1x2x128xf32> to vector<2x128xf32>
    %c0_3 = arith.constant 0 : index
    %c1 = arith.constant 1 : index
    %c0_4 = arith.constant 0 : index
    %c0_5 = arith.constant 0 : index
    %3 = vector.load %arg5[%c0_3, %c1, %c0_4, %c0_5] : memref<1x4x2x128xf32, #tpu.memory_space<vmem>>, vector<1x1x2x128xf32>
    %4 = vector.shape_cast %3 : vector<1x1x2x128xf32> to vector<2x128xf32>
    %c0_6 = arith.constant 0 : index
    %c2 = arith.constant 2 : index
    %c0_7 = arith.constant 0 : index
    %c0_8 = arith.constant 0 : index
    %5 = vector.load %arg5[%c0_6, %c2, %c0_7, %c0_8] : memref<1x4x2x128xf32, #tpu.memory_space<vmem>>, vector<1x1x2x128xf32>
    %6 = vector.shape_cast %5 : vector<1x1x2x128xf32> to vector<2x128xf32>
    %c0_9 = arith.constant 0 : index
    %c3 = arith.constant 3 : index
    %c0_10 = arith.constant 0 : index
    %c0_11 = arith.constant 0 : index
    %7 = vector.load %arg5[%c0_9, %c3, %c0_10, %c0_11] : memref<1x4x2x128xf32, #tpu.memory_space<vmem>>, vector<1x1x2x128xf32>
    %8 = vector.shape_cast %7 : vector<1x1x2x128xf32> to vector<2x128xf32>
    %c0_i32 = arith.constant 0 : i32
    %9 = arith.addi %0, %c0_i32 : i32
    %10 = arith.index_cast %9 : i32 to index
    %11 = memref.load %arg2[%10] : memref<24xf32, #tpu.memory_space<smem>>
    %12 = vector.broadcast %11 : f32 to vector<2x128xf32>
    %13 = arith.mulf %12, %2 : vector<2x128xf32>
    %c1_i32 = arith.constant 1 : i32
    %14 = arith.addi %0, %c1_i32 : i32
    %15 = arith.index_cast %14 : i32 to index
    %16 = memref.load %arg2[%15] : memref<24xf32, #tpu.memory_space<smem>>
    %17 = vector.broadcast %16 : f32 to vector<2x128xf32>
    %18 = arith.mulf %17, %4 : vector<2x128xf32>
    %19 = arith.addf %13, %18 : vector<2x128xf32>
    %c2_i32 = arith.constant 2 : i32
    %20 = arith.addi %0, %c2_i32 : i32
    %21 = arith.index_cast %20 : i32 to index
    %22 = memref.load %arg2[%21] : memref<24xf32, #tpu.memory_space<smem>>
    %23 = vector.broadcast %22 : f32 to vector<2x128xf32>
    %24 = arith.mulf %23, %6 : vector<2x128xf32>
    %25 = arith.addf %19, %24 : vector<2x128xf32>
    %c3_i32 = arith.constant 3 : i32
    %26 = arith.addi %0, %c3_i32 : i32
    %27 = arith.index_cast %26 : i32 to index
    %28 = memref.load %arg2[%27] : memref<24xf32, #tpu.memory_space<smem>>
    %29 = vector.broadcast %28 : f32 to vector<2x128xf32>
    %30 = arith.mulf %29, %8 : vector<2x128xf32>
    %31 = arith.addf %25, %30 : vector<2x128xf32>
    %c4_i32 = arith.constant 4 : i32
    %32 = arith.addi %0, %c4_i32 : i32
    %33 = arith.index_cast %32 : i32 to index
    %34 = memref.load %arg2[%33] : memref<24xf32, #tpu.memory_space<smem>>
    %35 = vector.broadcast %34 : f32 to vector<2x128xf32>
    %36 = arith.mulf %35, %2 : vector<2x128xf32>
    %c5_i32 = arith.constant 5 : i32
    %37 = arith.addi %0, %c5_i32 : i32
    %38 = arith.index_cast %37 : i32 to index
    %39 = memref.load %arg2[%38] : memref<24xf32, #tpu.memory_space<smem>>
    %40 = vector.broadcast %39 : f32 to vector<2x128xf32>
    %41 = arith.mulf %40, %4 : vector<2x128xf32>
    %42 = arith.addf %36, %41 : vector<2x128xf32>
    %c6_i32 = arith.constant 6 : i32
    %43 = arith.addi %0, %c6_i32 : i32
    %44 = arith.index_cast %43 : i32 to index
    %45 = memref.load %arg2[%44] : memref<24xf32, #tpu.memory_space<smem>>
    %46 = vector.broadcast %45 : f32 to vector<2x128xf32>
    %47 = arith.mulf %46, %6 : vector<2x128xf32>
    %48 = arith.addf %42, %47 : vector<2x128xf32>
    %c7_i32 = arith.constant 7 : i32
    %49 = arith.addi %0, %c7_i32 : i32
    %50 = arith.index_cast %49 : i32 to index
    %51 = memref.load %arg2[%50] : memref<24xf32, #tpu.memory_space<smem>>
    %52 = vector.broadcast %51 : f32 to vector<2x128xf32>
    %53 = arith.mulf %52, %8 : vector<2x128xf32>
    %54 = arith.addf %48, %53 : vector<2x128xf32>
    %c8_i32 = arith.constant 8 : i32
    %55 = arith.addi %0, %c8_i32 : i32
    %56 = arith.index_cast %55 : i32 to index
    %57 = memref.load %arg2[%56] : memref<24xf32, #tpu.memory_space<smem>>
    %58 = vector.broadcast %57 : f32 to vector<2x128xf32>
    %59 = arith.mulf %58, %2 : vector<2x128xf32>
    %c9_i32 = arith.constant 9 : i32
    %60 = arith.addi %0, %c9_i32 : i32
    %61 = arith.index_cast %60 : i32 to index
    %62 = memref.load %arg2[%61] : memref<24xf32, #tpu.memory_space<smem>>
    %63 = vector.broadcast %62 : f32 to vector<2x128xf32>
    %64 = arith.mulf %63, %4 : vector<2x128xf32>
    %65 = arith.addf %59, %64 : vector<2x128xf32>
    %c10_i32 = arith.constant 10 : i32
    %66 = arith.addi %0, %c10_i32 : i32
    %67 = arith.index_cast %66 : i32 to index
    %68 = memref.load %arg2[%67] : memref<24xf32, #tpu.memory_space<smem>>
    %69 = vector.broadcast %68 : f32 to vector<2x128xf32>
    %70 = arith.mulf %69, %6 : vector<2x128xf32>
    %71 = arith.addf %65, %70 : vector<2x128xf32>
    %c11_i32 = arith.constant 11 : i32
    %72 = arith.addi %0, %c11_i32 : i32
    %73 = arith.index_cast %72 : i32 to index
    %74 = memref.load %arg2[%73] : memref<24xf32, #tpu.memory_space<smem>>
    %75 = vector.broadcast %74 : f32 to vector<2x128xf32>
    %76 = arith.mulf %75, %8 : vector<2x128xf32>
    %77 = arith.addf %71, %76 : vector<2x128xf32>
    %cst = arith.constant 1.000000e-07 : f32
    %78 = vector.broadcast %cst : f32 to vector<2x128xf32>
    %79 = arith.addf %77, %78 : vector<2x128xf32>
    %80 = tpu.reciprocal %79 {approx = true} : vector<2x128xf32> -> vector<2x128xf32>
    %81 = arith.mulf %79, %80 : vector<2x128xf32>
    %cst_12 = arith.constant 2.000000e+00 : f32
    %82 = vector.broadcast %cst_12 : f32 to vector<2x128xf32>
    %83 = arith.subf %82, %81 : vector<2x128xf32>
    %84 = arith.mulf %80, %83 : vector<2x128xf32>
    %85 = arith.mulf %31, %84 : vector<2x128xf32>
    %86 = arith.mulf %54, %84 : vector<2x128xf32>
    %c0_13 = arith.constant 0 : index
    %c0_14 = arith.constant 0 : index
    %87 = vector.load %arg3[%c0_13, %c0_14] : memref<128x256xf32, #tpu.memory_space<vmem>>, vector<128x256xf32>
    %cst_15 = arith.constant dense<0.000000e+00> : vector<2x256xf32>
    %88 = tpu.matmul %85, %87, %cst_15 {dimension_numbers = #tpu.dot_dimension_numbers<[1], [0], [0], [1], [0, 0, 1, 1], [], []>} : vector<2x128xf32>, vector<128x256xf32>, vector<2x256xf32> -> vector<2x256xf32>
    %c0_16 = arith.constant 0 : index
    %c0_17 = arith.constant 0 : index
    %89 = vector.load %arg4[%c0_16, %c0_17] : memref<128x256xf32, #tpu.memory_space<vmem>>, vector<128x256xf32>
    %cst_18 = arith.constant dense<0.000000e+00> : vector<2x256xf32>
    %90 = tpu.matmul %86, %89, %cst_18 {dimension_numbers = #tpu.dot_dimension_numbers<[1], [0], [0], [1], [0, 0, 1, 1], [], []>} : vector<2x128xf32>, vector<128x256xf32>, vector<2x256xf32> -> vector<2x256xf32>
    %91 = arith.addf %88, %90 : vector<2x256xf32>
    %c0_19 = arith.constant 0 : index
    %c0_20 = arith.constant 0 : index
    %c0_21 = arith.constant 0 : index
    %92 = vector.load %arg6[%c0_19, %c0_20, %c0_21] : memref<1x2x256xf32, #tpu.memory_space<vmem>>, vector<1x2x256xf32>
    %93 = vector.shape_cast %92 : vector<1x2x256xf32> to vector<2x256xf32>
    %94 = vector.shape_cast %91 : vector<2x256xf32> to vector<1x2x256xf32>
    tpu.vector_store %arg6[%c0_19, %c0_20, %c0_21], %94 {strides = array<i32>} : memref<1x2x256xf32, #tpu.memory_space<vmem>>, vector<1x2x256xf32>,
    return
  }
  func.func @transform_0(%arg0: i32, %arg1: i32) -> i32 {
    %c0_i32 = arith.constant 0 : i32
    %c0_i32_0 = arith.constant 0 : i32
    return %c0_i32 : i32
  }
  func.func @transform_1(%arg0: i32, %arg1: i32) -> (i32, i32) {
    %c0_i32 = arith.constant 0 : i32
    %c0_i32_0 = arith.constant 0 : i32
    %c0_i32_1 = arith.constant 0 : i32
    return %c0_i32, %c0_i32_0 : i32, i32
  }
  func.func @transform_2(%arg0: i32, %arg1: i32) -> (i32, i32) {
    %c0_i32 = arith.constant 0 : i32
    %c0_i32_0 = arith.constant 0 : i32
    %c0_i32_1 = arith.constant 0 : i32
    return %c0_i32, %c0_i32_0 : i32, i32
  }
  func.func @transform_3(%arg0: i32, %arg1: i32) -> (i32, i32, i32, i32) {
    %c0_i32 = arith.constant 0 : i32
    %c0_i32_0 = arith.constant 0 : i32
    %c0_i32_1 = arith.constant 0 : i32
    return %arg0, %c0_i32, %arg1, %c0_i32_0 : i32, i32, i32, i32
  }
  func.func @transform_4(%arg0: i32, %arg1: i32) -> (i32, i32, i32) {
    %c0_i32 = arith.constant 0 : i32
    %c0_i32_0 = arith.constant 0 : i32
    return %arg0, %arg1, %c0_i32 : i32, i32, i32
  }
}

</mosaic_0001>

<llo_original>
// kernel: tpu_custom_call.1
$region0: #{tpu_custom_call.1}
  #allocation0 [shape = 'u32[]', space=smem, size = 0x4, offset = 0x4, fixed_abs, tag = 'smem constant byte address 0x4 - core index']
  #allocation1 [shape = 'u32[72,128]{1,0:T(1,128)}', space=vmem, size = 0x9000, scoped, tag = 'internal scratch']
  %s0 = inlined_call_operand.hbm [shape: f32[24], index: 0, kind: input, shape index: {}]
  %s1 = inlined_call_operand.hbm [shape: f32[128,256], index: 1, kind: input, shape index: {}]
  %s2 = inlined_call_operand.hbm [shape: f32[128,256], index: 2, kind: input, shape index: {}]
  %s3 = inlined_call_operand.hbm [shape: f32[2,4,2,128], index: 3, kind: input, shape index: {}]
  %s4 = inlined_call_operand.hbm [shape: f32[2,2,256], index: 4, kind: output, shape index: {}]
  %s5 = sld [smem:[#allocation0]]
  $region65: #{tpu_custom_call.1} parent=0
    _
  %s7 = ssub.s32 1, %s5
  %s8 = scalar_select 0, %s7, %s5
  $region1: #{tpu_custom_call.1} parent=0
    #allocation2 [shape = 'u8[512]{0}', space=smem, size = 0x200, scoped, tag = 'input window, operand 0, single buffered']
    #allocation3 [shape = 's32[2]{0}', space=sflag, size = 0x8, scoped, tag = 'scoped memory for tpu_custom_call.1']
    #allocation4 [shape = 's32[2]{0}', space=sflag, size = 0x8, scoped, tag = 'scoped memory for tpu_custom_call.1']
    #allocation5 [shape = 's32[2]{0}', space=sflag, size = 0x8, scoped, tag = 'scoped memory for tpu_custom_call.1']
    #allocation6 [shape = 'u8[131072]{0}', space=vmem, size = 0x20000, scoped, tag = 'input window, operand 1, single buffered']
    #allocation7 [shape = 'u8[131072]{0}', space=vmem, size = 0x20000, scoped, tag = 'input window, operand 2, single buffered']
    #allocation8 [shape = 's32[1]{0}', space=sflag, size = 0x4, scoped, tag = 'scoped memory for tpu_custom_call.1']
    #allocation9 [shape = 'u8[8192]{0}', space=vmem, size = 0x2000, scoped, tag = 'input window, operand 3']
    #allocation10 [shape = 'u8[4096]{0}', space=vmem, size = 0x1000, scoped, tag = 'output window, operand 0']
    %9 = vsyncpa [#allocation5], 0
    %10 = vsyncpa [#allocation3], 0
    %11 = vsyncpa [#allocation8], 0
    %12 = vsyncpa [#allocation4], 0
    %s13 = scalar_lea.sflag [#allocation4], 1
    %14 = vsyncpa %s13, 0
    loop: start=0, step=1, limit=4
    $region2: #{tpu_custom_call.1} parent=1 // loop_pre_header
      _
    $region3: #{tpu_custom_call.1} parent=1 // loop_header
      %s16 = sphi 0, %s20
      %p17 = scmp.ge.s32.totalorder %s16, 4
      %s23 = sphi 0, %s35
      %s24 = sphi 0, %s31
      %s25 = sphi 0, %s23
      %s26 = sphi 0, %s24
      %s27 = sphi 0, %s25
      %s28 = sphi 0, %s26
      %s36 = sphi 0, %s36
      %s38 = sphi 0, %s36
      %s39 = sphi 0, %s38
      %s53 = sphi 0, %s39
      %s57 = sphi 0, %s57
      %s59 = sphi 0, %s57
      %s60 = sphi 0, %s59
      %s74 = sphi 0, %s60
      %s78 = sphi 0, %s78
      %s80 = sphi 0, %s78
      %s81 = sphi 0, %s80
      %s95 = sphi 0, %s81
      %s103 = sphi 0, %s105
      %s106 = sphi 0, %s103
      %s107 = sphi 0, %s106
      %s123 = sphi 0, %s107
      %s131 = sphi 0, %s133
      %s134 = sphi 0, %s131
      %s135 = sphi 0, %s134
      %s151 = sphi 0, %s135
    $region4: #{tpu_custom_call.1} parent=1 // loop_header_branch
      %19 = sbr.rel (%p17) target = $region8
    $region5: #{tpu_custom_call.1} parent=1 // loop_body
      %s21 = ssub.s32 %s16, 1
      %s22 = ssub.s32 %s16, 2
      %s29 = sadd.s32 1, %s24
      %p30 = scmp.ge.s32.totalorder %s29, 1
      %s31 = scalar_select %p30, 0, %s29
      %s32 = sadd.s32 1, %s23
      %s33 = scalar_select %p30, %s32, %s23
      %p34 = scmp.ge.s32.totalorder %s33, 2
      %s35 = scalar_select %p34, 0, %s33
      %s37 = sadd.s32 %s36, 1
      %p40 = scmp.eq.s32.totalorder %s16, 1
      %p41 = scmp.ne.s32.totalorder %s36, %s38
      %p42 = scmp.eq.s32.totalorder %s16, 0
      %p43 = por %p41, %p42
      %p44 = scmp.ne.s32.totalorder %s36, %s38
      %p45 = scmp.eq.s32.totalorder %s21, 1
      %p46 = por %p44, %p45
      %p47 = scmp.ne.s32.totalorder %s38, %s39
      %p48 = scmp.eq.s32.totalorder %s21, 0
      %p49 = por %p47, %p48
      %p50 = scmp.ne.s32.totalorder %s38, %s39
      %p51 = scmp.eq.s32.totalorder %s22, 1
      %p52 = por %p50, %p51
      %p54 = scmp.ne.s32.totalorder %s39, %s53
      %p55 = scmp.eq.s32.totalorder %s22, 0
      %p56 = por %p54, %p55
      %s58 = sadd.s32 %s57, 1
      %p61 = scmp.eq.s32.totalorder %s16, 1
      %p62 = scmp.ne.s32.totalorder %s57, %s59
      %p63 = scmp.eq.s32.totalorder %s16, 0
      %p64 = por %p62, %p63
      %p65 = scmp.ne.s32.totalorder %s57, %s59
      %p66 = scmp.eq.s32.totalorder %s21, 1
      %p67 = por %p65, %p66
      %p68 = scmp.ne.s32.totalorder %s59, %s60
      %p69 = scmp.eq.s32.totalorder %s21, 0
      %p70 = por %p68, %p69
      %p71 = scmp.ne.s32.totalorder %s59, %s60
      %p72 = scmp.eq.s32.totalorder %s22, 1
      %p73 = por %p71, %p72
      %p75 = scmp.ne.s32.totalorder %s60, %s74
      %p76 = scmp.eq.s32.totalorder %s22, 0
      %p77 = por %p75, %p76
      %s79 = sadd.s32 %s78, 1
      %p82 = scmp.eq.s32.totalorder %s16, 1
      %p83 = scmp.ne.s32.totalorder %s78, %s80
      %p84 = scmp.eq.s32.totalorder %s16, 0
      %p85 = por %p83, %p84
      %p86 = scmp.ne.s32.totalorder %s78, %s80
      %p87 = scmp.eq.s32.totalorder %s21, 1
      %p88 = por %p86, %p87
      %p89 = scmp.ne.s32.totalorder %s80, %s81
      %p90 = scmp.eq.s32.totalorder %s21, 0
      %p91 = por %p89, %p90
      %p92 = scmp.ne.s32.totalorder %s80, %s81
      %p93 = scmp.eq.s32.totalorder %s22, 1
      %p94 = por %p92, %p93
      %p96 = scmp.ne.s32.totalorder %s81, %s95
      %p97 = scmp.eq.s32.totalorder %s22, 0
      %p98 = por %p96, %p97
      %s99 = ssub.s32 %s23, %s35
      %s100 = ssub.s32 %s24, %s31
      %s101 = sor.u32 %s99, %s100
      %p102 = scmp.eq.s32.totalorder %s101, 0
      %s104 = sadd.s32 %s103, 1
      %s105 = scalar_select %p102, %s103, %s104
      %p108 = pneg %p102
      %p109 = scmp.eq.s32.totalorder %s16, 1
      %p110 = por %p108, %p109
      %p111 = scmp.ne.s32.totalorder %s103, %s106
      %p112 = scmp.eq.s32.totalorder %s16, 0
      %p113 = por %p111, %p112
      %p114 = scmp.ne.s32.totalorder %s103, %s106
      %p115 = scmp.eq.s32.totalorder %s21, 1
      %p116 = por %p114, %p115
      %p117 = scmp.ne.s32.totalorder %s106, %s107
      %p118 = scmp.eq.s32.totalorder %s21, 0
      %p119 = por %p117, %p118
      %p120 = scmp.ne.s32.totalorder %s106, %s107
      %p121 = scmp.eq.s32.totalorder %s22, 1
      %p122 = por %p120, %p121
      %p124 = scmp.ne.s32.totalorder %s107, %s123
      %p125 = scmp.eq.s32.totalorder %s22, 0
      %p126 = por %p124, %p125
      %s127 = ssub.s32 %s23, %s35
      %s128 = ssub.s32 %s24, %s31
      %s129 = sor.u32 %s127, %s128
      %p130 = scmp.eq.s32.totalorder %s129, 0
      %s132 = sadd.s32 %s131, 1
      %s133 = scalar_select %p130, %s131, %s132
      %p136 = pneg %p130
      %p137 = scmp.eq.s32.totalorder %s16, 1
      %p138 = por %p136, %p137
      %p139 = scmp.ne.s32.totalorder %s131, %s134
      %p140 = scmp.eq.s32.totalorder %s16, 0
      %p141 = por %p139, %p140
      %p142 = scmp.ne.s32.totalorder %s131, %s134
      %p143 = scmp.eq.s32.totalorder %s21, 1
      %p144 = por %p142, %p143
      %p145 = scmp.ne.s32.totalorder %s134, %s135
      %p146 = scmp.eq.s32.totalorder %s21, 0
      %p147 = por %p145, %p146
      %p148 = scmp.ne.s32.totalorder %s134, %s135
      %p149 = scmp.eq.s32.totalorder %s22, 1
      %p150 = por %p148, %p149
      %p152 = scmp.ne.s32.totalorder %s135, %s151
      %p153 = scmp.eq.s32.totalorder %s22, 0
      %p154 = por %p152, %p153
      %p155 = scmp.le.s32.totalorder 1, %s16
      %p156 = scmp.lt.s32.totalorder %s16, 3
      %p157 = pnand %p155, %p156
      %p158 = pneg %p157
      // Predicated region
      $region9: #{tpu_custom_call.1} parent=5 // pred_check
        _
      $region10: #{tpu_custom_call.1} parent=5 // pred_check_branch
        %160 = sbr.rel (%p157) target = $region12
      $region11: #{tpu_custom_call.1} parent=5 // pred_region
        %s161 = ssub.s32 %s16, 1
        // Predicated region
        $region13: #{tpu_custom_call.1} parent=11 // pred_check
          %p162 = pneg %p49
        $region14: #{tpu_custom_call.1} parent=11 // pred_check_branch
          %164 = sbr.rel (%p162) target = $region16
        $region15: #{tpu_custom_call.1} parent=11 // pred_region
          %166 = vsyncadd [#allocation5], 0
          %s168 = sshll.u32 %s0, 4
          %s169 = int_to_ptr.hbm [resolvable:$true] %s168
          %171 = dma.hbm_to_smem %s169, 16, [#allocation2], [#allocation5]
        $region16: #{tpu_custom_call.1} parent=11 // pred_fallthru
          _
        // Predicated region
        $region17: #{tpu_custom_call.1} parent=11 // pred_check
          %p172 = pneg %p70
        $region18: #{tpu_custom_call.1} parent=11 // pred_check_branch
          %174 = sbr.rel (%p172) target = $region20
        $region19: #{tpu_custom_call.1} parent=11 // pred_region
          %176 = vsyncadd [#allocation3], 0
          %s177 = sshll.u32 %s1, 4
          %s178 = int_to_ptr.hbm [resolvable:$true] %s177
          %s179 = sshll.u32 [#allocation6], 4
          %s180 = int_to_ptr.vmem [resolvable:$true] %s179
          %185 = dma.hbm_to_vmem [thread:$0]  %s178, 4096, %s180, [#allocation3], 256, 256, 16
        $region20: #{tpu_custom_call.1} parent=11 // pred_fallthru
          _
        // Predicated region
        $region21: #{tpu_custom_call.1} parent=11 // pred_check
          %p186 = pneg %p91
        $region22: #{tpu_custom_call.1} parent=11 // pred_check_branch
          %188 = sbr.rel (%p186) target = $region24
        $region23: #{tpu_custom_call.1} parent=11 // pred_region
          %190 = vsyncadd [#allocation8], 0
          %s191 = sshll.u32 %s2, 4
          %s192 = int_to_ptr.hbm [resolvable:$true] %s191
          %s193 = sshll.u32 [#allocation7], 4
          %s194 = int_to_ptr.vmem [resolvable:$true] %s193
          %199 = dma.hbm_to_vmem [thread:$0]  %s192, 4096, %s194, [#allocation8], 256, 256, 16
        $region24: #{tpu_custom_call.1} parent=11 // pred_fallthru
          _
      $region12: #{tpu_custom_call.1} parent=5 // pred_fallthru
        _
      %p200 = scmp.lt.s32.totalorder %s16, 2
      // Predicated region
      $region25: #{tpu_custom_call.1} parent=5 // pred_check
        %p201 = pneg %p200
      $region26: #{tpu_custom_call.1} parent=5 // pred_check_branch
        %203 = sbr.rel (%p201) target = $region28
      $region27: #{tpu_custom_call.1} parent=5 // pred_region
        // Predicated region
        $region29: #{tpu_custom_call.1} parent=27 // pred_check
          %p204 = pneg %p113
        $region30: #{tpu_custom_call.1} parent=27 // pred_check_branch
          %206 = sbr.rel (%p204) target = $region32
        $region31: #{tpu_custom_call.1} parent=27 // pred_region
          %s207 = sand.u32 %s16, 1
          %s208 = scalar_lea.sflag [#allocation3], %s207
          %s209 = sand.u32 %s103, 1
          %s210 = smul.addr %s209, 8
          %s211 = scalar_lea.vmem [#allocation9], %s210
          %213 = vsyncadd %s208, 0
          %s214 = smul.addr %s23, 4
          %s215 = sadd.s32 %s24, %s214
          %s216 = smul.addr %s215, 2
          %s217 = scalar_lea.hbm %s3, %s216
          %s218 = sshll.u32 %s217, 4
          %s219 = int_to_ptr.hbm [resolvable:$true] %s218
          %s220 = sshll.u32 %s211, 4
          %s221 = int_to_ptr.vmem [resolvable:$true] %s220
          %226 = dma.hbm_to_vmem [thread:$0]  %s219, 128, %s221, %s208, 32, 32, 2
        $region32: #{tpu_custom_call.1} parent=27 // pred_fallthru
          _
      $region28: #{tpu_custom_call.1} parent=5 // pred_fallthru
        _
      %p227 = scmp.le.s32.totalorder 1, %s16
      %p228 = scmp.lt.s32.totalorder %s16, 3
      %p229 = pnand %p227, %p228
      %p230 = pneg %p229
      // Predicated region
      $region33: #{tpu_custom_call.1} parent=5 // pred_check
        _
      $region34: #{tpu_custom_call.1} parent=5 // pred_check_branch
        %232 = sbr.rel (%p229) target = $region36
      $region35: #{tpu_custom_call.1} parent=5 // pred_region
        %s233 = ssub.s32 %s16, 1
        // Predicated region
        $region37: #{tpu_custom_call.1} parent=35 // pred_check
          %p234 = pneg %p49
        $region38: #{tpu_custom_call.1} parent=35 // pred_check_branch
          %236 = sbr.rel (%p234) target = $region40
        $region39: #{tpu_custom_call.1} parent=35 // pred_region
          %238 = dma.done [#allocation5], 16
        $region40: #{tpu_custom_call.1} parent=35 // pred_fallthru
          _
        // Predicated region
        $region41: #{tpu_custom_call.1} parent=35 // pred_check
          %p239 = pneg %p70
        $region42: #{tpu_custom_call.1} parent=35 // pred_check_branch
          %241 = sbr.rel (%p239) target = $region44
        $region43: #{tpu_custom_call.1} parent=35 // pred_region
          %243 = dma.done [#allocation3], 4096
        $region44: #{tpu_custom_call.1} parent=35 // pred_fallthru
          _
        // Predicated region
        $region45: #{tpu_custom_call.1} parent=35 // pred_check
          %p244 = pneg %p91
        $region46: #{tpu_custom_call.1} parent=35 // pred_check_branch
          %246 = sbr.rel (%p244) target = $region48
        $region47: #{tpu_custom_call.1} parent=35 // pred_region
          %248 = dma.done [#allocation8], 4096
        $region48: #{tpu_custom_call.1} parent=35 // pred_fallthru
          _
        %s249 = sand.u32 %s21, 1
        %s250 = scalar_lea.sflag [#allocation3], %s249
        %s251 = sand.u32 %s106, 1
        %s252 = smul.addr %s251, 8
        %s253 = scalar_lea.vmem [#allocation9], %s252
        // Predicated region
        $region49: #{tpu_custom_call.1} parent=35 // pred_check
          %p254 = pneg %p119
        $region50: #{tpu_custom_call.1} parent=35 // pred_check_branch
          %256 = sbr.rel (%p254) target = $region52
        $region51: #{tpu_custom_call.1} parent=35 // pred_region
          %258 = dma.done %s250, 128
        $region52: #{tpu_custom_call.1} parent=35 // pred_fallthru
          _
        %259 = sfence
        %p260 = pneg %p49
        %p261 = pneg %p46
        %p262 = pneg %p70
        %p263 = pneg %p67
        %p264 = pneg %p91
        %p265 = pneg %p88
        %s266 = sand.u32 %s21, 1
        %s267 = scalar_lea.sflag [#allocation3], %s266
        %s268 = sand.u32 %s106, 1
        %s269 = smul.addr %s268, 8
        %s270 = scalar_lea.vmem [#allocation9], %s269
        %p271 = pneg %p119
        %p272 = pneg %p116
        %p273 = pneg %p147
        %p274 = pneg %p144
        %s275 = sand.u32 %s134, 1
        %s276 = scalar_lea.sflag [#allocation4], %s275
        %s277 = sand.u32 %s134, 1
        %s278 = smul.addr %s277, 4
        %s279 = scalar_lea.vmem [#allocation10], %s278
        %s280 = smul.u32 %s25, 12
        %v281 = vld [vmem:[%s253] sm:$0x3]
        %s282 = scalar_lea.vmem %s253, 2 [#allocation9]
        %v283 = vld [vmem:[%s282] sm:$0x3]
        %s284 = scalar_lea.vmem %s253, 4 [#allocation9]
        %v285 = vld [vmem:[%s284] sm:$0x3]
        %s286 = scalar_lea.vmem %s253, 6 [#allocation9]
        %v287 = vld [vmem:[%s286] sm:$0x3]
        %s288 = sld [smem:[#allocation2 + %s280]]
        %v289 = vstv %s288
        %v290 = vmul.f32 %v289, %v281
        %s291 = sadd.s32 %s280, 1
        %s292 = sld [smem:[#allocation2 + %s291]]
        %v293 = vstv %s292
        %v294 = vmul.f32 %v293, %v283
        %v295 = vadd.f32 %v290, %v294
        %s296 = sadd.s32 %s280, 2
        %s297 = sld [smem:[#allocation2 + %s296]]
        %v298 = vstv %s297
        %v299 = vmul.f32 %v298, %v285
        %v300 = vadd.f32 %v295, %v299
        %s301 = sadd.s32 %s280, 3
        %s302 = sld [smem:[#allocation2 + %s301]]
        %v303 = vstv %s302
        %v304 = vmul.f32 %v303, %v287
        %v305 = vadd.f32 %v300, %v304
        %s306 = sadd.s32 %s280, 4
        %s307 = sld [smem:[#allocation2 + %s306]]
        %v308 = vstv %s307
        %v309 = vmul.f32 %v308, %v281
        %s310 = sadd.s32 %s280, 5
        %s311 = sld [smem:[#allocation2 + %s310]]
        %v312 = vstv %s311
        %v313 = vmul.f32 %v312, %v283
        %v314 = vadd.f32 %v309, %v313
        %s315 = sadd.s32 %s280, 6
        %s316 = sld [smem:[#allocation2 + %s315]]
        %v317 = vstv %s316
        %v318 = vmul.f32 %v317, %v285
        %v319 = vadd.f32 %v314, %v318
        %s320 = sadd.s32 %s280, 7
        %s321 = sld [smem:[#allocation2 + %s320]]
        %v322 = vstv %s321
        %v323 = vmul.f32 %v322, %v287
        %v324 = vadd.f32 %v319, %v323
        %s325 = sadd.s32 %s280, 8
        %s326 = sld [smem:[#allocation2 + %s325]]
        %v327 = vstv %s326
        %v328 = vmul.f32 %v327, %v281
        %s329 = sadd.s32 %s280, 9
        %s330 = sld [smem:[#allocation2 + %s329]]
        %v331 = vstv %s330
        %v332 = vmul.f32 %v331, %v283
        %v333 = vadd.f32 %v328, %v332
        %s334 = sadd.s32 %s280, 10
        %s335 = sld [smem:[#allocation2 + %s334]]
        %v336 = vstv %s335
        %v337 = vmul.f32 %v336, %v285
        %v338 = vadd.f32 %v333, %v337
        %s339 = sadd.s32 %s280, 11
        %s340 = sld [smem:[#allocation2 + %s339]]
        %v341 = vstv %s340
        %v342 = vmul.f32 %v341, %v287
        %v343 = vadd.f32 %v338, %v342
        %v344 = vadd.f32 %v343, 1e-07
        %v345 = vrcp.pop %v344
        %v346 = vmul.f32 %v344, %v345
        %v347 = vsub.f32 2.0, %v346
        %v348 = vmul.f32 %v345, %v347
        %v349 = vmul.f32 %v305, %v348
        %v350 = vmul.f32 %v324, %v348
        %v351 = vld [vmem:[#allocation6] sm:$0xff]
        %v352 = vld [vmem:[#allocation6 + $0x8] sm:$0xff]
        %v353 = vld [vmem:[#allocation6 + $0x10] sm:$0xff]
        %v354 = vld [vmem:[#allocation6 + $0x18] sm:$0xff]
        %v355 = vld [vmem:[#allocation6 + $0x20] sm:$0xff]
        %v356 = vld [vmem:[#allocation6 + $0x28] sm:$0xff]
        %v357 = vld [vmem:[#allocation6 + $0x30] sm:$0xff]
        %v358 = vld [vmem:[#allocation6 + $0x38] sm:$0xff]
        %v359 = vld [vmem:[#allocation6 + $0x40] sm:$0xff]
        %v360 = vld [vmem:[#allocation6 + $0x48] sm:$0xff]
        %v361 = vld [vmem:[#allocation6 + $0x50] sm:$0xff]
        %v362 = vld [vmem:[#allocation6 + $0x58] sm:$0xff]
        %v363 = vld [vmem:[#allocation6 + $0x60] sm:$0xff]
        %v364 = vld [vmem:[#allocation6 + $0x68] sm:$0xff]
        %v365 = vld [vmem:[#allocation6 + $0x70] sm:$0xff]
        %v366 = vld [vmem:[#allocation6 + $0x78] sm:$0xff]
        %v367 = vld [vmem:[#allocation6 + $0x80] sm:$0xff]
        %v368 = vld [vmem:[#allocation6 + $0x88] sm:$0xff]
        %v369 = vld [vmem:[#allocation6 + $0x90] sm:$0xff]
        %v370 = vld [vmem:[#allocation6 + $0x98] sm:$0xff]
        %v371 = vld [vmem:[#allocation6 + $0xa0] sm:$0xff]
        %v372 = vld [vmem:[#allocation6 + $0xa8] sm:$0xff]
        %v373 = vld [vmem:[#allocation6 + $0xb0] sm:$0xff]
        %v374 = vld [vmem:[#allocation6 + $0xb8] sm:$0xff]
        %v375 = vld [vmem:[#allocation6 + $0xc0] sm:$0xff]
        %v376 = vld [vmem:[#allocation6 + $0xc8] sm:$0xff]
        %v377 = vld [vmem:[#allocation6 + $0xd0] sm:$0xff]
        %v378 = vld [vmem:[#allocation6 + $0xd8] sm:$0xff]
        %v379 = vld [vmem:[#allocation6 + $0xe0] sm:$0xff]
        %v380 = vld [vmem:[#allocation6 + $0xe8] sm:$0xff]
        %v381 = vld [vmem:[#allocation6 + $0xf0] sm:$0xff]
        %v382 = vld [vmem:[#allocation6 + $0xf8] sm:$0xff]
        %v383 = vld [vmem:[#allocation7] sm:$0xff]
        %v384 = vld [vmem:[#allocation7 + $0x8] sm:$0xff]
        %v385 = vld [vmem:[#allocation7 + $0x10] sm:$0xff]
        %v386 = vld [vmem:[#allocation7 + $0x18] sm:$0xff]
        %v387 = vld [vmem:[#allocation7 + $0x20] sm:$0xff]
        %v388 = vld [vmem:[#allocation7 + $0x28] sm:$0xff]
        %v389 = vld [vmem:[#allocation7 + $0x30] sm:$0xff]
        %v390 = vld [vmem:[#allocation7 + $0x38] sm:$0xff]
        %v391 = vld [vmem:[#allocation7 + $0x40] sm:$0xff]
        %v392 = vld [vmem:[#allocation7 + $0x48] sm:$0xff]
        %v393 = vld [vmem:[#allocation7 + $0x50] sm:$0xff]
        %v394 = vld [vmem:[#allocation7 + $0x58] sm:$0xff]
        %v395 = vld [vmem:[#allocation7 + $0x60] sm:$0xff]
        %v396 = vld [vmem:[#allocation7 + $0x68] sm:$0xff]
        %v397 = vld [vmem:[#allocation7 + $0x70] sm:$0xff]
        %v398 = vld [vmem:[#allocation7 + $0x78] sm:$0xff]
        %v399 = vld [vmem:[#allocation7 + $0x80] sm:$0xff]
        %v400 = vld [vmem:[#allocation7 + $0x88] sm:$0xff]
        %v401 = vld [vmem:[#allocation7 + $0x90] sm:$0xff]
        %v402 = vld [vmem:[#allocation7 + $0x98] sm:$0xff]
        %v403 = vld [vmem:[#allocation7 + $0xa0] sm:$0xff]
        %v404 = vld [vmem:[#allocation7 + $0xa8] sm:$0xff]
        %v405 = vld [vmem:[#allocation7 + $0xb0] sm:$0xff]
        %v406 = vld [vmem:[#allocation7 + $0xb8] sm:$0xff]
        %v407 = vld [vmem:[#allocation7 + $0xc0] sm:$0xff]
        %v408 = vld [vmem:[#allocation7 + $0xc8] sm:$0xff]
        %v409 = vld [vmem:[#allocation7 + $0xd0] sm:$0xff]
        %v410 = vld [vmem:[#allocation7 + $0xd8] sm:$0xff]
        %v411 = vld [vmem:[#allocation7 + $0xe0] sm:$0xff]
        %v412 = vld [vmem:[#allocation7 + $0xe8] sm:$0xff]
        %v413 = vld [vmem:[#allocation7 + $0xf0] sm:$0xff]
        %v414 = vld [vmem:[#allocation7 + $0xf8] sm:$0xff]
        %415 = vmatpush.msra.mxu0 %v413
        %416 = vmatpush.msra.mxu0 %v411
        %417 = vmatpush.msra.mxu0 %v409
        %418 = vmatpush.msra.mxu0 %v407
        %419 = vmatpush.msra.mxu0 %v405
        %420 = vmatpush.msra.mxu0 %v403
        %421 = vmatpush.msra.mxu0 %v401
        %422 = vmatpush.msra.mxu0 %v399
        %423 = vmatpush.msra.mxu0 %v397
        %424 = vmatpush.msra.mxu0 %v395
        %425 = vmatpush.msra.mxu0 %v393
        %426 = vmatpush.msra.mxu0 %v391
        %427 = vmatpush.msra.mxu0 %v389
        %428 = vmatpush.msra.mxu0 %v387
        %429 = vmatpush.msra.mxu0 %v385
        %430 = vmatpush.msra.mxu0 %v383
        %431 = vmatmul.f32.gmra.mxu0 %v350
        %v432 = vpop.f32.mrf.mxu0
        %v433 = vadd.f32 0.0, %v432
        %434 = vdwg.mxu0
        %435 = vmatpush.msra.mxu0 %v414
        %436 = vmatpush.msra.mxu0 %v412
        %437 = vmatpush.msra.mxu0 %v410
        %438 = vmatpush.msra.mxu0 %v408
        %439 = vmatpush.msra.mxu0 %v406
        %440 = vmatpush.msra.mxu0 %v404
        %441 = vmatpush.msra.mxu0 %v402
        %442 = vmatpush.msra.mxu0 %v400
        %443 = vmatpush.msra.mxu0 %v398
        %444 = vmatpush.msra.mxu0 %v396
        %445 = vmatpush.msra.mxu0 %v394
        %446 = vmatpush.msra.mxu0 %v392
        %447 = vmatpush.msra.mxu0 %v390
        %448 = vmatpush.msra.mxu0 %v388
        %449 = vmatpush.msra.mxu0 %v386
        %450 = vmatpush.msra.mxu0 %v384
        %451 = vmatmul.f32.gmra.mxu0 %v350
        %v452 = vpop.f32.mrf.mxu0
        %v453 = vadd.f32 0.0, %v452
        %454 = vdwg.mxu0
        %455 = vmatpush.msra.mxu0 %v381
        %456 = vmatpush.msra.mxu0 %v379
        %457 = vmatpush.msra.mxu0 %v377
        %458 = vmatpush.msra.mxu0 %v375
        %459 = vmatpush.msra.mxu0 %v373
        %460 = vmatpush.msra.mxu0 %v371
        %461 = vmatpush.msra.mxu0 %v369
        %462 = vmatpush.msra.mxu0 %v367
        %463 = vmatpush.msra.mxu0 %v365
        %464 = vmatpush.msra.mxu0 %v363
        %465 = vmatpush.msra.mxu0 %v361
        %466 = vmatpush.msra.mxu0 %v359
        %467 = vmatpush.msra.mxu0 %v357
        %468 = vmatpush.msra.mxu0 %v355
        %469 = vmatpush.msra.mxu0 %v353
        %470 = vmatpush.msra.mxu0 %v351
        %471 = vmatmul.f32.gmra.mxu0 %v349
        %v472 = vpop.f32.mrf.mxu0
        %v473 = vadd.f32 %v433, %v472
        %474 = vdwg.mxu0
        %475 = vmatpush.msra.mxu0 %v382
        %476 = vmatpush.msra.mxu0 %v380
        %477 = vmatpush.msra.mxu0 %v378
        %478 = vmatpush.msra.mxu0 %v376
        %479 = vmatpush.msra.mxu0 %v374
        %480 = vmatpush.msra.mxu0 %v372
        %481 = vmatpush.msra.mxu0 %v370
        %482 = vmatpush.msra.mxu0 %v368
        %483 = vmatpush.msra.mxu0 %v366
        %484 = vmatpush.msra.mxu0 %v364
        %485 = vmatpush.msra.mxu0 %v362
        %486 = vmatpush.msra.mxu0 %v360
        %487 = vmatpush.msra.mxu0 %v358
        %488 = vmatpush.msra.mxu0 %v356
        %489 = vmatpush.msra.mxu0 %v354
        %490 = vmatpush.msra.mxu0 %v352
        %491 = vmatmul.f32.gmra.mxu0 %v349
        %v492 = vpop.f32.mrf.mxu0
        %v493 = vadd.f32 %v453, %v492
        %494 = vdwg.mxu0
        %v497 = vrot.slane %v493, 6
        %vm498 = vcmask 1041408
        %v499 = vsel %vm498, %v473, %v497
        %501 = vst [vmem:[%s279] sm:$0xf] %v499
        %s502 = sand.u32 %s134, 1
        %s503 = scalar_lea.sflag [#allocation4], %s502
        %s504 = sand.u32 %s134, 1
        %s505 = smul.addr %s504, 4
        %s506 = scalar_lea.vmem [#allocation10], %s505
        // Predicated region
        $region53: #{tpu_custom_call.1} parent=35 // pred_check
          %p507 = pneg %p144
        $region54: #{tpu_custom_call.1} parent=35 // pred_check_branch
          %509 = sbr.rel (%p507) target = $region56
        $region55: #{tpu_custom_call.1} parent=35 // pred_region
          %511 = vsyncadd %s503, 0
          %s512 = smul.addr %s26, 2
          %s513 = smul.addr %s25, 2
          %s514 = sadd.s32 %s512, %s513
          %s515 = smul.addr %s514, 2
          %s516 = scalar_lea.hbm %s4, %s515
          %s518 = sshll.u32 %s506, 4
          %s519 = int_to_ptr.vmem [resolvable:$true] %s518
          %s520 = sshll.u32 %s516, 4
          %s521 = int_to_ptr.hbm [resolvable:$true] %s520
          %523 = dma.vmem_to_hbm [thread:$0]  %s519, 64, %s521, %s503
        $region56: #{tpu_custom_call.1} parent=35 // pred_fallthru
          _
      $region36: #{tpu_custom_call.1} parent=5 // pred_fallthru
        _
      %p524 = scmp.le.s32.totalorder 2, %s16
      // Predicated region
      $region57: #{tpu_custom_call.1} parent=5 // pred_check
        %p525 = pneg %p524
      $region58: #{tpu_custom_call.1} parent=5 // pred_check_branch
        %527 = sbr.rel (%p525) target = $region60
      $region59: #{tpu_custom_call.1} parent=5 // pred_region
        %s528 = ssub.s32 %s16, 2
        // Predicated region
        $region61: #{tpu_custom_call.1} parent=59 // pred_check
          %p529 = pneg %p150
        $region62: #{tpu_custom_call.1} parent=59 // pred_check_branch
          %531 = sbr.rel (%p529) target = $region64
        $region63: #{tpu_custom_call.1} parent=59 // pred_region
          %s532 = sand.u32 %s135, 1
          %s533 = scalar_lea.sflag [#allocation4], %s532
          %s534 = sand.u32 %s135, 1
          %s535 = smul.addr %s534, 4
          %s536 = scalar_lea.vmem [#allocation10], %s535
          %538 = dma.done %s533, 64
        $region64: #{tpu_custom_call.1} parent=59 // pred_fallthru
          _
      $region60: #{tpu_custom_call.1} parent=5 // pred_fallthru
        _
    $region6: #{tpu_custom_call.1} parent=1 // loop_footer
      %s20 = sadd.s32 1, %s16
    $region7: #{tpu_custom_call.1} parent=1 // loop_footer_branch
      %15 = sbr.rel target = $region3
    $region8: #{tpu_custom_call.1} parent=1 // loop_exit
      _
    %539 = vsyncpa [#allocation3], 1
    %s540 = scalar_lea.sflag [#allocation3], 1
    %541 = vsyncpa %s540, 1
    %542 = vsyncpa [#allocation8], 1
    %543 = vsyncpa [#allocation4], 1
    %s544 = scalar_lea.sflag [#allocation4], 1
    %545 = vsyncpa %s544, 1
    %546 = vsyncpa [#allocation5], 1
    %s547 = scalar_lea.sflag [#allocation5], 1
    %548 = vsyncpa %s547, 1

</llo_original>
